<compile_context>
chip_gen: v5e
topology: v5e:2x2
jax: 0.10.0
libtpu: 0.0.40
codegen_flags: <defaults>
</compile_context>

<pallas_src>
import functools

import jax
import jax.numpy as jnp
from jax.experimental import pallas as pl
from jax.experimental.pallas import tpu as pltpu

INPUT_SIZE = 100
HIDDEN_SIZE = 64
OUTPUT_SIZE = 5

OUT_PAD = 128   # 5 -> 128 padded output columns: lane-dense store, sliced in wrapper


def _round_up(x, m):
    return (x + m - 1) // m * m


def _bf16_activations_default():
    """Use bf16 tanh only where the VPU/EUP has a bf16 path (v6e / v7x)."""
    try:
        kind = jax.devices()[0].device_kind.lower()
    except Exception:
        return False
    return any(tag in kind for tag in ("v6", "v7", "7x"))


def encoder_kernel(x_ref, w1_ref, b1_ref, w2_ref, b2_ref, w3_ref, b3_ref,
                   o_ref, *, act_dtype):
    # x arrives as raw f32 rows (TB, 100); cast to bf16 in-kernel so the wrapper
    # never materializes an extra padded/cast copy of x in HBM.
    x = x_ref[...].astype(jnp.bfloat16)

    h1 = jnp.dot(x, w1_ref[...], preferred_element_type=jnp.float32) + b1_ref[...]
    h1 = jnp.tanh(h1.astype(act_dtype))

    h2 = jnp.dot(h1.astype(jnp.bfloat16), w2_ref[...],
                 preferred_element_type=jnp.float32) + b2_ref[...]
    h2 = jnp.tanh(h2.astype(act_dtype))

    h3 = jnp.dot(h2.astype(jnp.bfloat16), w3_ref[...],
                 preferred_element_type=jnp.float32) + b3_ref[...]
    h3 = jnp.tanh(h3.astype(act_dtype))

    o_ref[...] = h3.astype(o_ref.dtype)


def _choose_tb(B, tb):
    """Batch tile: large to amortize per-step overhead, multiple of 16 rows
    (bf16 sublane packing), and >= 2 grid steps for big batches (v7x megacore)."""
    if B <= tb:
        TB = _round_up(max(B, 16), 16)
    else:
        TB = tb
    if B >= 512 and _round_up(B, TB) // TB < 2:
        TB = _round_up(pl.cdiv(B, 2), 16)
    return TB


def encoder_forward(x, packed_params, tb=2048, bf16_act=None):
    """x: (B, INPUT_SIZE) f32.  packed_params: output of pack_params()."""
    w1, b1, w2, b2, w3, b3 = packed_params
    B = x.shape[0]

    if bf16_act is None:
        bf16_act = _bf16_activations_default()
    act_dtype = jnp.bfloat16 if bf16_act else jnp.float32

    TB = _choose_tb(B, tb)
    Bp = _round_up(B, TB)

    # Only batch padding; the 100-wide feature axis is streamed as-is (f32).
    x_in = x if Bp == B else jnp.pad(x, ((0, Bp - B), (0, 0)))

    grid = (Bp // TB,)
    const = lambda i: (0, 0)  # weights / biases resident in VMEM across the grid

    flops = 2 * Bp * (INPUT_SIZE * HIDDEN_SIZE
                      + HIDDEN_SIZE * HIDDEN_SIZE
                      + HIDDEN_SIZE * OUT_PAD)
    transcendentals = Bp * (HIDDEN_SIZE + HIDDEN_SIZE + OUT_PAD)
    bytes_accessed = (Bp * INPUT_SIZE * 4                        # x (f32)
                      + Bp * OUT_PAD * 2                          # output (bf16)
                      + (INPUT_SIZE * HIDDEN_SIZE
                         + HIDDEN_SIZE * HIDDEN_SIZE
                         + HIDDEN_SIZE * OUT_PAD) * 2             # weights (bf16)
                      + (HIDDEN_SIZE + HIDDEN_SIZE + OUT_PAD) * 4)  # biases (f32)

    out = pl.pallas_call(
        functools.partial(encoder_kernel, act_dtype=act_dtype),
        out_shape=jax.ShapeDtypeStruct((Bp, OUT_PAD), jnp.bfloat16),
        grid=grid,
        in_specs=[
            pl.BlockSpec((TB, INPUT_SIZE), lambda i: (i, 0)),   # x rows, f32
            pl.BlockSpec(w1.shape, const),
            pl.BlockSpec(b1.shape, const),
            pl.BlockSpec(w2.shape, const),
            pl.BlockSpec(b2.shape, const),
            pl.BlockSpec(w3.shape, const),
            pl.BlockSpec(b3.shape, const),
        ],
        out_specs=pl.BlockSpec((TB, OUT_PAD), lambda i: (i, 0)),
        compiler_params=pltpu.CompilerParams(
            dimension_semantics=("parallel",)),
        cost_estimate=pl.CostEstimate(
            flops=flops,
            transcendentals=transcendentals,
            bytes_accessed=bytes_accessed),
    )(x_in, w1, b1, w2, b2, w3, b3)

    # Slice the 5 real columns, upcast once.  Note: the stored outputs are bf16
    # (~3 significant digits), consistent with the bf16 MXU operands.
    return out[:B, :OUTPUT_SIZE].astype(jnp.float32)


def init_params(key):
    """f32 params mirroring nn.Linear default uniform(-1/sqrt(fan_in), +),
    stored as W:[in, out] so each layer is y = x @ W + b."""
    ks = jax.random.split(key, 6)

    def linear(kw, kb, fan_in, fan_out):
        bound = 1.0 / jnp.sqrt(fan_in)
        w = jax.random.uniform(kw, (fan_in, fan_out), jnp.float32, -bound, bound)
        b = jax.random.uniform(kb, (1, fan_out), jnp.float32, -bound, bound)
        return w, b

    w1, b1 = linear(ks[0], ks[1], INPUT_SIZE, HIDDEN_SIZE)
    w2, b2 = linear(ks[2], ks[3], HIDDEN_SIZE, HIDDEN_SIZE)
    w3, b3 = linear(ks[4], ks[5], HIDDEN_SIZE, OUTPUT_SIZE)
    return (w1, b1, w2, b2, w3, b3)


def pack_params(params):
    """Cast MXU operands to bf16; pad only the output-facing weight/bias to the
    lane-dense OUT_PAD width (baked in once, outside the kernel)."""
    w1, b1, w2, b2, w3, b3 = params

    w1p = w1.astype(jnp.bfloat16)                     # (100, 64): Mosaic pads K
    w2p = w2.astype(jnp.bfloat16)                     # (64, 64)

    w3p = jnp.zeros((HIDDEN_SIZE, OUT_PAD), jnp.float32)
    w3p = w3p.at[:, :OUTPUT_SIZE].set(w3).astype(jnp.bfloat16)

    b3p = jnp.zeros((1, OUT_PAD), jnp.float32)
    b3p = b3p.at[:, :OUTPUT_SIZE].set(b3)

    return (w1p, b1, w2p, b2, w3p, b3p)


def reference_forward(x, params):
    """Pure f32 reference with the original (unpadded) parameters."""
    w1, b1, w2, b2, w3, b3 = params
    h = jnp.tanh(x @ w1 + b1)
    h = jnp.tanh(h @ w2 + b2)
    return jnp.tanh(h @ w3 + b3)


if __name__ == "__main__":
    key = jax.random.PRNGKey(0)
    k_params, k_x = jax.random.split(key)

    params = init_params(k_params)
    packed = pack_params(params)

    batch = 8
    x = jax.random.normal(k_x, (batch, INPUT_SIZE), jnp.float32)

    out = encoder_forward(x, packed)
    out = jax.block_until_ready(out)

    ref = reference_forward(x, params)
    assert out.shape == (batch, OUTPUT_SIZE), out.shape
    # bf16 MXU operands + bf16 output vs f32 reference: relaxed tolerance.
    assert jnp.allclose(out, ref, atol=2e-2, rtol=2e-2), "mismatch vs reference"

    print("KERNEL_OK")
</pallas_src>

<mosaic_0001>
module attributes {stable_mosaic.version = 11 : i64} {
  func.func @encoder_kernel(%arg0: i32, %arg1: memref<16x100xf32, #tpu.memory_space<vmem>>, %arg2: memref<100x64xbf16, #tpu.memory_space<vmem>>, %arg3: memref<1x64xf32, #tpu.memory_space<vmem>>, %arg4: memref<64x64xbf16, #tpu.memory_space<vmem>>, %arg5: memref<1x64xf32, #tpu.memory_space<vmem>>, %arg6: memref<64x128xbf16, #tpu.memory_space<vmem>>, %arg7: memref<1x128xf32, #tpu.memory_space<vmem>>, %arg8: memref<16x128xbf16, #tpu.memory_space<vmem>>) attributes {dimension_semantics = [#tpu.dimension_semantics<parallel>], iteration_bounds = array<i64: 1>, scalar_prefetch = 0 : i64, scratch_operands = 0 : i64, tpu.core_type = #tpu.core_type<tc>, window_params = [{transform_indices = @transform_0, window_bounds = array<i64: 16, 100>}, {pipeline_mode = #tpu.pipeline_mode<synchronous>, transform_indices = @transform_1, window_bounds = array<i64: 100, 64>}, {pipeline_mode = #tpu.pipeline_mode<synchronous>, transform_indices = @transform_2, window_bounds = array<i64: 1, 64>}, {pipeline_mode = #tpu.pipeline_mode<synchronous>, transform_indices = @transform_3, window_bounds = array<i64: 64, 64>}, {pipeline_mode = #tpu.pipeline_mode<synchronous>, transform_indices = @transform_4, window_bounds = array<i64: 1, 64>}, {pipeline_mode = #tpu.pipeline_mode<synchronous>, transform_indices = @transform_5, window_bounds = array<i64: 64, 128>}, {pipeline_mode = #tpu.pipeline_mode<synchronous>, transform_indices = @transform_6, window_bounds = array<i64: 1, 128>}, {transform_indices = @transform_7, window_bounds = array<i64: 16, 128>}]} {
    %c0 = arith.constant 0 : index
    %c0_0 = arith.constant 0 : index
    %0 = vector.load %arg1[%c0, %c0_0] : memref<16x100xf32, #tpu.memory_space<vmem>>, vector<16x100xf32>
    %1 = arith.truncf %0 : vector<16x100xf32> to vector<16x100xbf16>
    %c0_1 = arith.constant 0 : index
    %c0_2 = arith.constant 0 : index
    %2 = vector.load %arg2[%c0_1, %c0_2] : memref<100x64xbf16, #tpu.memory_space<vmem>>, vector<100x64xbf16>
    %cst = arith.constant dense<0.000000e+00> : vector<16x64xf32>
    %3 = tpu.matmul %1, %2, %cst {dimension_numbers = #tpu.dot_dimension_numbers<[1], [0], [0], [1], [0, 0, 1, 1], [], []>} : vector<16x100xbf16>, vector<100x64xbf16>, vector<16x64xf32> -> vector<16x64xf32>
    %c0_3 = arith.constant 0 : index
    %c0_4 = arith.constant 0 : index
    %4 = vector.load %arg3[%c0_3, %c0_4] : memref<1x64xf32, #tpu.memory_space<vmem>>, vector<1x64xf32>
    %5 = vector.broadcast %4 : vector<1x64xf32> to vector<16x64xf32>
    %6 = arith.addf %3, %5 : vector<16x64xf32>
    %7 = math.tanh %6 : vector<16x64xf32>
    %8 = arith.truncf %7 : vector<16x64xf32> to vector<16x64xbf16>
    %c0_5 = arith.constant 0 : index
    %c0_6 = arith.constant 0 : index
    %9 = vector.load %arg4[%c0_5, %c0_6] : memref<64x64xbf16, #tpu.memory_space<vmem>>, vector<64x64xbf16>
    %cst_7 = arith.constant dense<0.000000e+00> : vector<16x64xf32>
    %10 = tpu.matmul %8, %9, %cst_7 {dimension_numbers = #tpu.dot_dimension_numbers<[1], [0], [0], [1], [0, 0, 1, 1], [], []>} : vector<16x64xbf16>, vector<64x64xbf16>, vector<16x64xf32> -> vector<16x64xf32>
    %c0_8 = arith.constant 0 : index
    %c0_9 = arith.constant 0 : index
    %11 = vector.load %arg5[%c0_8, %c0_9] : memref<1x64xf32, #tpu.memory_space<vmem>>, vector<1x64xf32>
    %12 = vector.broadcast %11 : vector<1x64xf32> to vector<16x64xf32>
    %13 = arith.addf %10, %12 : vector<16x64xf32>
    %14 = math.tanh %13 : vector<16x64xf32>
    %15 = arith.truncf %14 : vector<16x64xf32> to vector<16x64xbf16>
    %c0_10 = arith.constant 0 : index
    %c0_11 = arith.constant 0 : index
    %16 = vector.load %arg6[%c0_10, %c0_11] : memref<64x128xbf16, #tpu.memory_space<vmem>>, vector<64x128xbf16>
    %cst_12 = arith.constant dense<0.000000e+00> : vector<16x128xf32>
    %17 = tpu.matmul %15, %16, %cst_12 {dimension_numbers = #tpu.dot_dimension_numbers<[1], [0], [0], [1], [0, 0, 1, 1], [], []>} : vector<16x64xbf16>, vector<64x128xbf16>, vector<16x128xf32> -> vector<16x128xf32>
    %c0_13 = arith.constant 0 : index
    %c0_14 = arith.constant 0 : index
    %18 = vector.load %arg7[%c0_13, %c0_14] : memref<1x128xf32, #tpu.memory_space<vmem>>, vector<1x128xf32>
    %19 = vector.broadcast %18 : vector<1x128xf32> to vector<16x128xf32>
    %20 = arith.addf %17, %19 : vector<16x128xf32>
    %21 = math.tanh %20 : vector<16x128xf32>
    %22 = arith.truncf %21 : vector<16x128xf32> to vector<16x128xbf16>
    %c0_15 = arith.constant 0 : index
    %c0_16 = arith.constant 0 : index
    %23 = vector.load %arg8[%c0_15, %c0_16] : memref<16x128xbf16, #tpu.memory_space<vmem>>, vector<16x128xbf16>
    tpu.vector_store %arg8[%c0_15, %c0_16], %22 {strides = array<i32>} : memref<16x128xbf16, #tpu.memory_space<vmem>>, vector<16x128xbf16>,
    return
  }
  func.func @transform_0(%arg0: i32) -> (i32, i32) {
    %c0_i32 = arith.constant 0 : i32
    %c0_i32_0 = arith.constant 0 : i32
    return %arg0, %c0_i32 : i32, i32
  }
  func.func @transform_1(%arg0: i32) -> (i32, i32) {
    %c0_i32 = arith.constant 0 : i32
    %c0_i32_0 = arith.constant 0 : i32
    %c0_i32_1 = arith.constant 0 : i32
    return %c0_i32, %c0_i32_0 : i32, i32
  }
  func.func @transform_2(%arg0: i32) -> (i32, i32) {
    %c0_i32 = arith.constant 0 : i32
    %c0_i32_0 = arith.constant 0 : i32
    %c0_i32_1 = arith.constant 0 : i32
    return %c0_i32, %c0_i32_0 : i32, i32
  }
  func.func @transform_3(%arg0: i32) -> (i32, i32) {
    %c0_i32 = arith.constant 0 : i32
    %c0_i32_0 = arith.constant 0 : i32
    %c0_i32_1 = arith.constant 0 : i32
    return %c0_i32, %c0_i32_0 : i32, i32
  }
  func.func @transform_4(%arg0: i32) -> (i32, i32) {
    %c0_i32 = arith.constant 0 : i32
    %c0_i32_0 = arith.constant 0 : i32
    %c0_i32_1 = arith.constant 0 : i32
    return %c0_i32, %c0_i32_0 : i32, i32
  }
  func.func @transform_5(%arg0: i32) -> (i32, i32) {
    %c0_i32 = arith.constant 0 : i32
    %c0_i32_0 = arith.constant 0 : i32
    %c0_i32_1 = arith.constant 0 : i32
    return %c0_i32, %c0_i32_0 : i32, i32
  }
  func.func @transform_6(%arg0: i32) -> (i32, i32) {
    %c0_i32 = arith.constant 0 : i32
    %c0_i32_0 = arith.constant 0 : i32
    %c0_i32_1 = arith.constant 0 : i32
    return %c0_i32, %c0_i32_0 : i32, i32
  }
  func.func @transform_7(%arg0: i32) -> (i32, i32) {
    %c0_i32 = arith.constant 0 : i32
    %c0_i32_0 = arith.constant 0 : i32
    return %arg0, %c0_i32 : i32, i32
  }
}

</mosaic_0001>

<llo_original>
// kernel: tpu_custom_call.1
$region0: #{tpu_custom_call.1}
  #allocation0 [shape = 'u32[]', space=smem, size = 0x4, offset = 0x4, fixed_abs, tag = 'smem constant byte address 0x4 - core index']
  #allocation1 [shape = 'u32[72,128]{1,0:T(1,128)}', space=vmem, size = 0x9000, scoped, tag = 'internal scratch']
  %s0 = inlined_call_operand.vmem [shape: f32[16,100], index: 0, kind: input, shape index: {}]
  %s1 = inlined_call_operand.vmem [shape: bf16[100,64], index: 1, kind: input, shape index: {}]
  %s2 = inlined_call_operand.vmem [shape: f32[1,64], index: 2, kind: input, shape index: {}]
  %s3 = inlined_call_operand.vmem [shape: bf16[64,64], index: 3, kind: input, shape index: {}]
  %s4 = inlined_call_operand.vmem [shape: f32[1,64], index: 4, kind: input, shape index: {}]
  %s5 = inlined_call_operand.vmem [shape: bf16[64,128], index: 5, kind: input, shape index: {}]
  %s6 = inlined_call_operand.vmem [shape: f32[1,128], index: 6, kind: input, shape index: {}]
  %s7 = inlined_call_operand.hbm [shape: bf16[16,128], index: 7, kind: output, shape index: {}]
  %s8 = sld [smem:[#allocation0]]
  $region38: #{tpu_custom_call.1} parent=0
    _
  %s10 = ssub.s32 1, %s8
  %s11 = scalar_select 0, %s10, %s8
  $region1: #{tpu_custom_call.1} parent=0
    #allocation2 [shape = 'u8[4096]{0}', space=vmem, size = 0x1000, scoped, tag = 'output window, operand 0, single buffered']
    #allocation3 [shape = 's32[1]{0}', space=sflag, size = 0x4, scoped, tag = 'scoped memory for tpu_custom_call.1']
    %12 = vsyncpa [#allocation3], 0
    // Predicated region
    $region2: #{tpu_custom_call.1} parent=1 // pred_check
      _
    $region3: #{tpu_custom_call.1} parent=1 // pred_check_branch
      %14 = sbr.rel (0) target = $region5
    $region4: #{tpu_custom_call.1} parent=1 // pred_region
      _
    $region5: #{tpu_custom_call.1} parent=1 // pred_fallthru
      _
    // Predicated region
    $region6: #{tpu_custom_call.1} parent=1 // pred_check
      _
    $region7: #{tpu_custom_call.1} parent=1 // pred_check_branch
      %16 = sbr.rel (0) target = $region9
    $region8: #{tpu_custom_call.1} parent=1 // pred_region
      _
    $region9: #{tpu_custom_call.1} parent=1 // pred_fallthru
      _
    // Predicated region
    $region10: #{tpu_custom_call.1} parent=1 // pred_check
      _
    $region11: #{tpu_custom_call.1} parent=1 // pred_check_branch
      %18 = sbr.rel (0) target = $region13
    $region12: #{tpu_custom_call.1} parent=1 // pred_region
      _
    $region13: #{tpu_custom_call.1} parent=1 // pred_fallthru
      _
    // Predicated region
    $region14: #{tpu_custom_call.1} parent=1 // pred_check
      _
    $region15: #{tpu_custom_call.1} parent=1 // pred_check_branch
      %20 = sbr.rel (0) target = $region17
    $region16: #{tpu_custom_call.1} parent=1 // pred_region
      _
    $region17: #{tpu_custom_call.1} parent=1 // pred_fallthru
      _
    // Predicated region
    $region18: #{tpu_custom_call.1} parent=1 // pred_check
      _
    $region19: #{tpu_custom_call.1} parent=1 // pred_check_branch
      %22 = sbr.rel (0) target = $region21
    $region20: #{tpu_custom_call.1} parent=1 // pred_region
      _
    $region21: #{tpu_custom_call.1} parent=1 // pred_fallthru
      _
    // Predicated region
    $region22: #{tpu_custom_call.1} parent=1 // pred_check
      _
    $region23: #{tpu_custom_call.1} parent=1 // pred_check_branch
      %24 = sbr.rel (0) target = $region25
    $region24: #{tpu_custom_call.1} parent=1 // pred_region
      _
    $region25: #{tpu_custom_call.1} parent=1 // pred_fallthru
      _
    // Predicated region
    $region26: #{tpu_custom_call.1} parent=1 // pred_check
      _
    $region27: #{tpu_custom_call.1} parent=1 // pred_check_branch
      %26 = sbr.rel (0) target = $region29
    $region28: #{tpu_custom_call.1} parent=1 // pred_region
      _
    $region29: #{tpu_custom_call.1} parent=1 // pred_fallthru
      _
    %v28 = vld [vmem:[%s0] sm:$0xff]
    %v29 = vld [vmem:[%s0 + $0x8] sm:$0xff]
    %v30 = vpack.c.bf16 %v29, %v28
    %v31 = vld [vmem:[%s1] sm:$0xf]
    %v32 = vld [vmem:[%s1 + $0x4] sm:$0xf]
    %v33 = vld [vmem:[%s1 + $0x8] sm:$0xf]
    %v34 = vld [vmem:[%s1 + $0xc] sm:$0xf]
    %v35 = vld [vmem:[%s1 + $0x10] sm:$0xf]
    %v36 = vld [vmem:[%s1 + $0x14] sm:$0xf]
    %v37 = vld [vmem:[%s1 + $0x18] sm:$0xf]
    %v38 = vld [vmem:[%s1 + $0x1c] sm:$0xf]
    %v39 = vld [vmem:[%s1 + $0x20] sm:$0xf]
    %v40 = vld [vmem:[%s1 + $0x24] sm:$0xf]
    %v41 = vld [vmem:[%s1 + $0x28] sm:$0xf]
    %v42 = vld [vmem:[%s1 + $0x2c] sm:$0xf]
    %v43 = vld [vmem:[%s1 + $0x30] sm:$0x3]
    %v44 = vld [vmem:[%s2] sm:$0x1]
    %v46 = vperm.slane %v44, 0
    %v61 = vunpack.c.l.b16 %v31
    %v62 = vunpack.c.l.b16 %v32
    %v63 = vunpack.c.l.b16 %v33
    %v64 = vunpack.c.l.b16 %v34
    %v65 = vunpack.c.l.b16 %v35
    %v66 = vunpack.c.l.b16 %v36
    %v67 = vunpack.c.l.b16 %v37
    %v68 = vunpack.c.l.b16 %v38
    %v69 = vunpack.c.l.b16 %v39
    %v70 = vunpack.c.l.b16 %v40
    %v71 = vunpack.c.l.b16 %v41
    %v72 = vunpack.c.l.b16 %v42
    %v73 = vunpack.c.l.b16 %v43
    %v74 = vpack.c.b16 %v62, %v61
    %v75 = vpack.c.b16 %v64, %v63
    %v76 = vpack.c.b16 %v66, %v65
    %v77 = vpack.c.b16 %v68, %v67
    %v78 = vpack.c.b16 %v70, %v69
    %v79 = vpack.c.b16 %v72, %v71
    %v80 = vpack.c.b16 %v73, %v73
    %vm87 = vcmask 818176
    %v89 = vsel %vm87, %v30, 0
    %vm91 = vcmask 1041408
    %v93 = vsel %vm91, %v80, 0
    %95 = vmatpush.bf16.msra.mxu0 0
    %96 = vmatpush.bf16.msra.mxu0 %v93
    %97 = vmatpush.bf16.msra.mxu0 %v79
    %98 = vmatpush.bf16.msra.mxu0 %v78
    %99 = vmatpush.bf16.msra.mxu0 %v77
    %100 = vmatpush.bf16.msra.mxu0 %v76
    %101 = vmatpush.bf16.msra.mxu0 %v75
    %102 = vmatpush.bf16.msra.mxu0 %v74
    %103 = vmatmul.bf16.gmra.mxu0 %v89
    %v104 = vpop.f32.mrf.mxu0
    %v105 = vadd.f32 %v46, %v104
    %v106 = vpop.f32.mrf.mxu0
    %v107 = vadd.f32 %v46, %v106
    %108 = vdwg.mxu0
    %v109 = vtanh.pop %v105
    %v110 = vtanh.pop %v107
    %v111 = vpack.c.bf16 %v110, %v109
    %v112 = vld [vmem:[%s3] sm:$0xf]
    %v113 = vld [vmem:[%s3 + $0x4] sm:$0xf]
    %v114 = vld [vmem:[%s3 + $0x8] sm:$0xf]
    %v115 = vld [vmem:[%s3 + $0xc] sm:$0xf]
    %v116 = vld [vmem:[%s3 + $0x10] sm:$0xf]
    %v117 = vld [vmem:[%s3 + $0x14] sm:$0xf]
    %v118 = vld [vmem:[%s3 + $0x18] sm:$0xf]
    %v119 = vld [vmem:[%s3 + $0x1c] sm:$0xf]
    %v120 = vld [vmem:[%s4] sm:$0x1]
    %v122 = vperm.slane %v120, 0
    %v132 = vunpack.c.l.b16 %v112
    %v133 = vunpack.c.l.b16 %v113
    %v134 = vunpack.c.l.b16 %v114
    %v135 = vunpack.c.l.b16 %v115
    %v136 = vunpack.c.l.b16 %v116
    %v137 = vunpack.c.l.b16 %v117
    %v138 = vunpack.c.l.b16 %v118
    %v139 = vunpack.c.l.b16 %v119
    %v140 = vpack.c.b16 %v133, %v132
    %v141 = vpack.c.b16 %v135, %v134
    %v142 = vpack.c.b16 %v137, %v136
    %v143 = vpack.c.b16 %v139, %v138
    %vm148 = vcmask 523264
    %v150 = vsel %vm148, %v111, 0
    %152 = vmatpush.bf16.msra.mxu0 0
    %153 = vmatpush.bf16.msra.mxu0 0
    %154 = vmatpush.bf16.msra.mxu0 0
    %155 = vmatpush.bf16.msra.mxu0 0
    %156 = vmatpush.bf16.msra.mxu0 %v143
    %157 = vmatpush.bf16.msra.mxu0 %v142
    %158 = vmatpush.bf16.msra.mxu0 %v141
    %159 = vmatpush.bf16.msra.mxu0 %v140
    %160 = vmatmul.bf16.gmra.mxu0 %v150
    %v161 = vpop.f32.mrf.mxu0
    %v162 = vadd.f32 %v122, %v161
    %v163 = vpop.f32.mrf.mxu0
    %v164 = vadd.f32 %v122, %v163
    %165 = vdwg.mxu0
    %v166 = vtanh.pop %v162
    %v167 = vtanh.pop %v164
    %v168 = vpack.c.bf16 %v167, %v166
    %v169 = vld [vmem:[%s5] sm:$0xf]
    %v170 = vld [vmem:[%s5 + $0x4] sm:$0xf]
    %v171 = vld [vmem:[%s5 + $0x8] sm:$0xf]
    %v172 = vld [vmem:[%s5 + $0xc] sm:$0xf]
    %v173 = vld [vmem:[%s5 + $0x10] sm:$0xf]
    %v174 = vld [vmem:[%s5 + $0x14] sm:$0xf]
    %v175 = vld [vmem:[%s5 + $0x18] sm:$0xf]
    %v176 = vld [vmem:[%s5 + $0x1c] sm:$0xf]
    %v177 = vld [vmem:[%s6] sm:$0x1]
    %v179 = vperm.slane %v177, 0
    %v189 = vunpack.c.l.b16 %v169
    %v190 = vunpack.c.l.b16 %v170
    %v191 = vunpack.c.l.b16 %v171
    %v192 = vunpack.c.l.b16 %v172
    %v193 = vunpack.c.l.b16 %v173
    %v194 = vunpack.c.l.b16 %v174
    %v195 = vunpack.c.l.b16 %v175
    %v196 = vunpack.c.l.b16 %v176
    %v197 = vpack.c.b16 %v190, %v189
    %v198 = vpack.c.b16 %v192, %v191
    %v199 = vpack.c.b16 %v194, %v193
    %v200 = vpack.c.b16 %v196, %v195
    %v206 = vsel %vm148, %v168, 0
    %208 = vmatpush.bf16.msra.mxu0 0
    %209 = vmatpush.bf16.msra.mxu0 0
    %210 = vmatpush.bf16.msra.mxu0 0
    %211 = vmatpush.bf16.msra.mxu0 0
    %212 = vmatpush.bf16.msra.mxu0 %v200
    %213 = vmatpush.bf16.msra.mxu0 %v199
    %214 = vmatpush.bf16.msra.mxu0 %v198
    %215 = vmatpush.bf16.msra.mxu0 %v197
    %216 = vmatmul.bf16.gmra.mxu0 %v206
    %v217 = vpop.f32.mrf.mxu0
    %v218 = vadd.f32 %v179, %v217
    %v219 = vpop.f32.mrf.mxu0
    %v220 = vadd.f32 %v179, %v219
    %221 = vdwg.mxu0
    %v222 = vtanh.pop %v218
    %v223 = vtanh.pop %v220
    %v224 = vpack.c.bf16 %v222, %v222
    %v225 = vpack.c.bf16 %v223, %v223
    %226 = vst [vmem:[#allocation2] sm:$0xf] %v224
    %227 = vst [vmem:[#allocation2 + $0x4] sm:$0xf] %v225
    // Predicated region
    $region30: #{tpu_custom_call.1} parent=1 // pred_check
      _
    $region31: #{tpu_custom_call.1} parent=1 // pred_check_branch
      %229 = sbr.rel (0) target = $region33
    $region32: #{tpu_custom_call.1} parent=1 // pred_region
      %231 = vsyncadd [#allocation3], 0
      %s232 = sshll.u32 [#allocation2], 4
      %s233 = int_to_ptr.vmem [resolvable:$true] %s232
      %s234 = sshll.u32 %s7, 4
      %s235 = int_to_ptr.hbm [resolvable:$true] %s234
      %240 = dma.vmem_to_hbm [thread:$0]  %s233, 128, %s235, [#allocation3], 64, 64, 4
    $region33: #{tpu_custom_call.1} parent=1 // pred_fallthru
      _
    // Predicated region
    $region34: #{tpu_custom_call.1} parent=1 // pred_check
      _
    $region35: #{tpu_custom_call.1} parent=1 // pred_check_branch
      %242 = sbr.rel (0) target = $region37
    $region36: #{tpu_custom_call.1} parent=1 // pred_region
      %244 = dma.done [#allocation3], 128
    $region37: #{tpu_custom_call.1} parent=1 // pred_fallthru
      _
    %245 = vsyncpa [#allocation3], 1

</llo_original>
